<compile_context>
chip_gen: v7x
topology: tpu7x:2x2x1
jax: 0.10.0
libtpu: 0.0.40
codegen_flags: <defaults>
</compile_context>

<pallas_src>
import jax
import jax.numpy as jnp
from jax.experimental import pallas as pl
from jax.experimental.pallas import tpu as pltpu


def _add_one_kernel(x_ref, o_ref):
    # Elementwise hot path: whole VMEM tile, single VPU add.
    o_ref[...] = x_ref[...] + jnp.asarray(1, dtype=o_ref.dtype)


def _default_block_bytes():
    # 2 MiB per buffer is already >=85% of the measured HBM roofline and,
    # double-buffered for input+output (4x), fits under v5e's 16 MiB scoped
    # VMEM default and v7x's 64 MiB physical VMEM.  v6e (128 MiB VMEM,
    # 32 MiB scoped default) can afford 4 MiB blocks for fewer grid steps.
    try:
        kind = jax.devices()[0].device_kind.lower()
        if "v6" in kind:
            return 4 * 1024 * 1024
    except Exception:
        pass
    return 2 * 1024 * 1024


def _choose_lanes(n):
    """Largest lane width (multiple of 128) dividing n, preferring rows >= 8."""
    fallback = None
    for lanes in (1024, 512, 256, 128):
        if n % lanes == 0:
            if fallback is None:
                fallback = lanes
            if n // lanes >= 8:
                return lanes
    return fallback  # None if n is not a multiple of 128


def _round_down_8(v):
    return (v // 8) * 8


def nutty_forward(x, *, block_bytes=None, donate_input=False):
    """Return x + 1 with the same shape/dtype, computed by a Pallas TPU kernel."""
    orig_shape = x.shape
    dtype = x.dtype
    n = x.size
    if n == 0:
        return x  # (x + 1) of an empty array is the empty array

    if block_bytes is None:
        block_bytes = _default_block_bytes()
    itemsize = jnp.dtype(dtype).itemsize

    lanes = _choose_lanes(n)
    padded = lanes is None
    if padded:
        # TODO(synk): rare path (total size not a multiple of 128) — costs one
        # extra pad copy + slice around the kernel.
        lanes = 128
        n_eff = pl.cdiv(n, lanes) * lanes
        x2d = jnp.pad(jnp.ravel(x), (0, n_eff - n)).reshape(n_eff // lanes, lanes)
    else:
        n_eff = n
        x2d = x.reshape(n // lanes, lanes)  # free reshape of a contiguous array
    rows = n_eff // lanes

    # Pick tile_rows: ~block_bytes per buffer, a multiple of 8, and (when the
    # tensor is big enough) at least 2 grid steps so the "parallel" grid axis
    # shards across both v7x TensorCores.
    bytes_per_row = lanes * itemsize
    target_rows = max(8, _round_down_8(block_bytes // bytes_per_row))
    if rows > target_rows:
        tile_rows = target_rows
    elif rows >= 16:
        tile_rows = max(8, _round_down_8(rows // 2))
    else:
        tile_rows = rows  # block dim equals the full array dim -> always legal

    grid = (pl.cdiv(rows, tile_rows),)  # ragged last block is masked by Pallas

    out2d = pl.pallas_call(
        _add_one_kernel,
        out_shape=jax.ShapeDtypeStruct((rows, lanes), dtype),
        grid_spec=pltpu.PrefetchScalarGridSpec(
            num_scalar_prefetch=0,
            grid=grid,
            in_specs=[pl.BlockSpec((tile_rows, lanes), lambda i: (i, 0))],
            out_specs=pl.BlockSpec((tile_rows, lanes), lambda i: (i, 0)),
        ),
        compiler_params=pltpu.CompilerParams(
            dimension_semantics=("parallel",),
        ),
        cost_estimate=pl.CostEstimate(
            flops=n_eff,
            transcendentals=0,
            bytes_accessed=2 * n_eff * itemsize,
        ),
        input_output_aliases=({0: 0} if donate_input else {}),
    )(x2d)

    if padded:
        return out2d.reshape(-1)[:n].reshape(orig_shape)
    return out2d.reshape(orig_shape)


if __name__ == "__main__":
    key = jax.random.PRNGKey(0)

    # Small NCHW input consistent with the module's generic elementwise forward.
    x = jax.random.normal(key, (2, 4, 16, 16), dtype=jnp.float32)
    out = jax.block_until_ready(nutty_forward(x))
    assert out.shape == x.shape and out.dtype == x.dtype
    assert jnp.allclose(out, x + 1.0), "mismatch vs reference (aligned, 1 block)"

    # Slightly larger aligned tensor: exercises the multi-step "parallel" grid.
    x2 = jax.random.normal(jax.random.PRNGKey(1), (4, 8, 32, 32), dtype=jnp.float32)
    out2 = jax.block_until_ready(nutty_forward(x2))
    assert jnp.allclose(out2, x2 + 1.0), "mismatch vs reference (tiled grid)"

    # Size not divisible by 128: exercises the rare pad fallback path.
    x3 = jax.random.normal(jax.random.PRNGKey(2), (3, 5, 7), dtype=jnp.float32)
    out3 = jax.block_until_ready(nutty_forward(x3))
    assert jnp.allclose(out3, x3 + 1.0), "mismatch vs reference (pad fallback)"

    print("KERNEL_OK")
</pallas_src>

<mosaic_0001>
module attributes {stable_mosaic.version = 11 : i64} {
  func.func @_add_one_kernel(%arg0: i32, %arg1: memref<8x256xf32, #tpu.memory_space<vmem>>, %arg2: memref<8x256xf32, #tpu.memory_space<vmem>>) attributes {dimension_semantics = [#tpu.dimension_semantics<parallel>], iteration_bounds = array<i64: 1>, scalar_prefetch = 0 : i64, scratch_operands = 0 : i64, tpu.core_type = #tpu.core_type<tc>, window_params = [{transform_indices = @transform_0, window_bounds = array<i64: 8, 256>}, {transform_indices = @transform_1, window_bounds = array<i64: 8, 256>}]} {
    %c0 = arith.constant 0 : index
    %c0_0 = arith.constant 0 : index
    %0 = vector.load %arg1[%c0, %c0_0] : memref<8x256xf32, #tpu.memory_space<vmem>>, vector<8x256xf32>
    %cst = arith.constant 1.000000e+00 : f32
    %1 = vector.broadcast %cst : f32 to vector<8x256xf32>
    %2 = arith.addf %0, %1 : vector<8x256xf32>
    %c0_1 = arith.constant 0 : index
    %c0_2 = arith.constant 0 : index
    %3 = vector.load %arg2[%c0_1, %c0_2] : memref<8x256xf32, #tpu.memory_space<vmem>>, vector<8x256xf32>
    tpu.vector_store %arg2[%c0_1, %c0_2], %2 {strides = array<i32>} : memref<8x256xf32, #tpu.memory_space<vmem>>, vector<8x256xf32>,
    return
  }
  func.func @transform_0(%arg0: i32) -> (i32, i32) {
    %c0_i32 = arith.constant 0 : i32
    %c0_i32_0 = arith.constant 0 : i32
    return %arg0, %c0_i32 : i32, i32
  }
  func.func @transform_1(%arg0: i32) -> (i32, i32) {
    %c0_i32 = arith.constant 0 : i32
    %c0_i32_0 = arith.constant 0 : i32
    return %arg0, %c0_i32 : i32, i32
  }
}

</mosaic_0001>

<llo_original>
// kernel: tpu_custom_call.1
$region0: #{tpu_custom_call.1}
  #allocation0 [shape = 'u32[]', space=smem, size = 0x4, offset = 0x4, fixed_abs, tag = 'smem constant byte address 0x4 - core index']
  #allocation1 [shape = 'u32[144,128]{1,0:T(1,128)}', space=vmem, size = 0x12000, scoped, tag = 'internal scratch']
  %s0 = inlined_call_operand.hbm [shape: f32[8,256], index: 0, kind: input, shape index: {}]
  %s1 = inlined_call_operand.hbm [shape: f32[8,256], index: 1, kind: output, shape index: {}]
  %s2 = sld [smem:[#allocation0]]
  $region18: #{tpu_custom_call.1} parent=0
    _
  %s4 = ssub.s32 1, %s2
  %s5 = scalar_select 0, %s4, %s2
  $region1: #{tpu_custom_call.1} parent=0
    #allocation2 [shape = 'u8[8192]{0}', space=vmem, size = 0x2000, scoped, tag = 'input window, operand 0, single buffered']
    #allocation3 [shape = 's32[1]{0}', space=sflag, size = 0x4, scoped, tag = 'scoped memory for tpu_custom_call.1']
    #allocation4 [shape = 's32[1]{0}', space=sflag, size = 0x4, scoped, tag = 'scoped memory for tpu_custom_call.1']
    #allocation5 [shape = 'u8[8192]{0}', space=vmem, size = 0x2000, scoped, tag = 'output window, operand 0, single buffered']
    %6 = vsyncpa [#allocation3], 0
    %7 = vsyncpa [#allocation4], 0
    // Predicated region
    $region2: #{tpu_custom_call.1} parent=1 // pred_check
      _
    $region3: #{tpu_custom_call.1} parent=1 // pred_check_branch
      %9 = sbr.rel (0) target = $region5
    $region4: #{tpu_custom_call.1} parent=1 // pred_region
      %s11 = ssub.s32 256, 256
      %12 = vsyncadd [#allocation3], %s11
      %s14 = sshll.u32 [#allocation2], 4
      %s15 = int_to_ptr.vmem [resolvable:$true] %s14
      %17 = dma.hbm_to_vmem [thread:$0]  %s0, 256, %s15, [#allocation3]
    $region5: #{tpu_custom_call.1} parent=1 // pred_fallthru
      _
    // Predicated region
    $region6: #{tpu_custom_call.1} parent=1 // pred_check
      _
    $region7: #{tpu_custom_call.1} parent=1 // pred_check_branch
      %19 = sbr.rel (0) target = $region9
    $region8: #{tpu_custom_call.1} parent=1 // pred_region
      %20 = dma.done [#allocation3], 256
    $region9: #{tpu_custom_call.1} parent=1 // pred_fallthru
      _
    %v21 = vld [vmem:[#allocation2] sm:$0xff]
    %v22 = vld [vmem:[#allocation2 + $0x8] sm:$0xff]
    %v23 = vadd.f32 %v21, 1.0
    %v24 = vadd.f32 %v22, 1.0
    %25 = vst [vmem:[#allocation5] sm:$0xff] %v23
    %26 = vst [vmem:[#allocation5 + $0x8] sm:$0xff] %v24
    // Predicated region
    $region10: #{tpu_custom_call.1} parent=1 // pred_check
      _
    $region11: #{tpu_custom_call.1} parent=1 // pred_check_branch
      %28 = sbr.rel (0) target = $region13
    $region12: #{tpu_custom_call.1} parent=1 // pred_region
      %s30 = ssub.s32 256, 256
      %31 = vsyncadd [#allocation4], %s30
      %s33 = sshll.u32 [#allocation5], 4
      %s34 = int_to_ptr.vmem [resolvable:$true] %s33
      %36 = dma.vmem_to_hbm [thread:$0]  %s34, 256, %s1, [#allocation4]
    $region13: #{tpu_custom_call.1} parent=1 // pred_fallthru
      _
    // Predicated region
    $region14: #{tpu_custom_call.1} parent=1 // pred_check
      _
    $region15: #{tpu_custom_call.1} parent=1 // pred_check_branch
      %38 = sbr.rel (0) target = $region17
    $region16: #{tpu_custom_call.1} parent=1 // pred_region
      %39 = dma.done [#allocation4], 256
    $region17: #{tpu_custom_call.1} parent=1 // pred_fallthru
      _
    %40 = vsyncpa [#allocation3], 1
    %41 = vsyncpa [#allocation4], 1

</llo_original>
